<compile_context>
chip_gen: v5e
topology: v5e:2x2
jax: 0.10.0
libtpu: 0.0.40
codegen_flags: <defaults>
</compile_context>

<pallas_src>
import math

import jax
import jax.numpy as jnp
from jax.experimental import pallas as pl
from jax.experimental.pallas import tpu as pltpu


# ----------------------------------------------------------------------------
# helpers
# ----------------------------------------------------------------------------
def _round_up(x, m):
    return -(-x // m) * m


def _pick_tile(dim, candidates):
    """Largest candidate tile that evenly divides `dim`, else the full dim."""
    for c in candidates:
        if dim % c == 0:
            return c
    return dim


def _padded_bytes(shape, dtype):
    """Approx VMEM footprint of one buffer after (8,128) tile padding."""
    s = list(shape)
    if len(s) >= 1:
        s[-1] = _round_up(s[-1], 128)
    if len(s) >= 2:
        s[-2] = _round_up(s[-2], 8)
    n = 1
    for d in s:
        n *= d
    return n * jnp.dtype(dtype).itemsize


_VMEM_BUDGET = None


def _device_vmem_budget():
    """~75% of per-core physical VMEM: 48 MiB on v7x, 96 MiB on v5e/v6e."""
    global _VMEM_BUDGET
    if _VMEM_BUDGET is None:
        cap = 64 * 1024 * 1024
        try:
            info = pltpu.get_tpu_info()
            cap = int(getattr(info, "vmem_capacity_bytes", cap)) or cap
        except Exception:
            pass
        cap = max(cap, 32 * 1024 * 1024)
        _VMEM_BUDGET = (cap * 3) // 4
    return _VMEM_BUDGET


def _vmem_limit(estimate_bytes):
    """Per-call scoped-VMEM limit: estimated working set (x1.5), floored/capped."""
    want = max(8 * 1024 * 1024, (int(estimate_bytes) * 3) // 2)
    return int(min(_device_vmem_budget(), want))


# ----------------------------------------------------------------------------
# Kernel 1: tiled linear  y = x @ w_t (+ b)   (w_t is pre-transposed to (K, N))
# ----------------------------------------------------------------------------
def _linear_kernel_bias(x_ref, w_ref, b_ref, o_ref, acc_ref):
    k = pl.program_id(2)

    @pl.when(k == 0)
    def _():
        acc_ref[...] = jnp.zeros_like(acc_ref)

    acc_ref[...] += jnp.dot(x_ref[...], w_ref[...],
                            preferred_element_type=jnp.float32)

    @pl.when(k == pl.num_programs(2) - 1)
    def _():
        o_ref[...] = (acc_ref[...] + b_ref[...]).astype(o_ref.dtype)


def _linear_kernel_nobias(x_ref, w_ref, o_ref, acc_ref):
    k = pl.program_id(2)

    @pl.when(k == 0)
    def _():
        acc_ref[...] = jnp.zeros_like(acc_ref)

    acc_ref[...] += jnp.dot(x_ref[...], w_ref[...],
                            preferred_element_type=jnp.float32)

    @pl.when(k == pl.num_programs(2) - 1)
    def _():
        o_ref[...] = acc_ref[...].astype(o_ref.dtype)


def _linear_pallas(x, w_t, b, out_dtype=jnp.float32):
    """x: (M, K), w_t: (K, N) pre-transposed weight, b: (N,) or None."""
    M, K = x.shape
    Kw, N = w_t.shape
    assert K == Kw

    tm = _pick_tile(M, (512, 256, 128, 64, 32, 16, 8))
    tn = _pick_tile(N, (512, 256, 128))
    tk = _pick_tile(K, (512, 256, 128))
    grid = (M // tm, N // tn, K // tk)

    in_specs = [pl.BlockSpec((tm, tk), lambda i, j, k: (i, k)),
                pl.BlockSpec((tk, tn), lambda i, j, k: (k, j))]
    args = [x, w_t]
    est = (2 * (_padded_bytes((tm, tk), x.dtype)
                + _padded_bytes((tk, tn), w_t.dtype)
                + _padded_bytes((tm, tn), out_dtype))
           + _padded_bytes((tm, tn), jnp.float32))

    if b is not None:
        in_specs.append(pl.BlockSpec((1, tn), lambda i, j, k: (0, j)))
        args.append(b.astype(jnp.float32).reshape(1, N))
        est += 2 * _padded_bytes((1, tn), jnp.float32)
        kernel = _linear_kernel_bias
    else:
        kernel = _linear_kernel_nobias   # no fake zero-bias DMA / dead add

    return pl.pallas_call(
        kernel,
        out_shape=jax.ShapeDtypeStruct((M, N), out_dtype),
        grid_spec=pltpu.PrefetchScalarGridSpec(
            num_scalar_prefetch=0,
            grid=grid,
            in_specs=in_specs,
            out_specs=pl.BlockSpec((tm, tn), lambda i, j, k: (i, j)),
            scratch_shapes=[pltpu.VMEM((tm, tn), jnp.float32)],
        ),
        compiler_params=pltpu.CompilerParams(
            dimension_semantics=("parallel", "parallel", "arbitrary"),
            vmem_limit_bytes=_vmem_limit(est),
        ),
    )(*args)


# ----------------------------------------------------------------------------
# Kernel 2: attention core.  grid = (bsz,), all heads of one batch element per
# step via head-batched dot_generals.
#   qkv_folded : (3, B*H, T, Dh)   (q scaling already folded into in-proj weight)
#   outputs    : attn (T, B, H, Dh) f32  and optionally head-averaged probs (B, T, S)
# ----------------------------------------------------------------------------
def _make_attention_kernel(num_heads, has_mask, need_weights, approx_recip):
    inv_h = 1.0 / num_heads

    def body(qkv_ref, mask, o_ref, p_ref):
        q = qkv_ref[0]          # (H, T, Dh)
        k = qkv_ref[1]          # (H, S, Dh)
        v = qkv_ref[2]          # (H, S, Dh)

        # Head-batched MXU matmuls: one traced dot_general per stage, no per-head
        # Python unroll (keeps code size / vreg pressure flat in H).
        s = jnp.einsum("hqd,hkd->hqk", q, k,
                       preferred_element_type=jnp.float32)       # (H, T, S) f32
        if mask is not None:
            s = s + mask[None, :, :]

        m = jnp.max(s, axis=-1, keepdims=True)
        e = jnp.exp(s - m)
        denom = jnp.sum(e, axis=-1, keepdims=True)
        p = e * pl.reciprocal(denom, approx=approx_recip)        # softmax, f32
        # attn_dropout == 0.0 (eval) -> no dropout applied

        o = jnp.einsum("hqk,hkd->hqd", p.astype(v.dtype), v,
                       preferred_element_type=jnp.float32)       # (H, T, Dh) f32

        # Store into the (T, b, H, Dh) output block so the downstream reshape to
        # (T*B, E) is free (no HBM transpose).  Stores only -- compute is batched.
        for h in range(num_heads):
            o_ref[:, 0, h, :] = o[h].astype(o_ref.dtype)

        if p_ref is not None:
            p_ref[0] = jnp.sum(p, axis=0) * inv_h   # head-averaged attention weights

    if has_mask and need_weights:
        def kernel(qkv_ref, mask_ref, o_ref, p_ref):
            body(qkv_ref, mask_ref[...], o_ref, p_ref)
    elif has_mask:
        def kernel(qkv_ref, mask_ref, o_ref):
            body(qkv_ref, mask_ref[...], o_ref, None)
    elif need_weights:
        def kernel(qkv_ref, o_ref, p_ref):
            body(qkv_ref, None, o_ref, p_ref)
    else:
        def kernel(qkv_ref, o_ref):
            body(qkv_ref, None, o_ref, None)
    return kernel


def _attention_pallas(qkv_folded, num_heads, attn_mask=None, need_weights=True,
                      approx_recip=False):
    three, BH, T, Dh = qkv_folded.shape
    assert three == 3
    H = num_heads
    B = BH // H
    S = T  # self-attention

    kernel = _make_attention_kernel(H, attn_mask is not None, need_weights,
                                    approx_recip)

    in_specs = [pl.BlockSpec((3, H, T, Dh), lambda b: (0, b, 0, 0))]
    args = [qkv_folded]

    est = (2 * _padded_bytes((3, H, T, Dh), qkv_folded.dtype)
           + 2 * _padded_bytes((T, 1, H, Dh), jnp.float32)
           + 3 * _padded_bytes((H, T, Dh), jnp.float32)      # q/k/v/o temps
           + 3 * _padded_bytes((H, T, S), jnp.float32))      # scores / exp / probs
    if attn_mask is not None:
        in_specs.append(pl.BlockSpec((T, S), lambda b: (0, 0)))
        args.append(attn_mask.astype(jnp.float32))
        est += 2 * _padded_bytes((T, S), jnp.float32)
    if need_weights:
        est += 2 * _padded_bytes((1, T, S), jnp.float32)

    out_spec_o = pl.BlockSpec((T, 1, H, Dh), lambda b: (0, b, 0, 0))
    shape_o = jax.ShapeDtypeStruct((T, B, H, Dh), jnp.float32)
    cparams = pltpu.CompilerParams(
        dimension_semantics=("parallel",),
        vmem_limit_bytes=_vmem_limit(est),
    )

    if need_weights:
        out, probs = pl.pallas_call(
            kernel,
            out_shape=(shape_o, jax.ShapeDtypeStruct((B, T, S), jnp.float32)),
            grid=(B,),
            in_specs=in_specs,
            out_specs=(out_spec_o, pl.BlockSpec((1, T, S), lambda b: (b, 0, 0))),
            compiler_params=cparams,
        )(*args)
        return out, probs

    out = pl.pallas_call(
        kernel,
        out_shape=shape_o,
        grid=(B,),
        in_specs=in_specs,
        out_specs=out_spec_o,
        compiler_params=cparams,
    )(*args)
    return out, None


# ----------------------------------------------------------------------------
# Module: parameter construction + forward (self-attention path: q == k == v)
# ----------------------------------------------------------------------------
class MultiheadAttentionPallas:
    def __init__(self, embed_dim, num_heads, key, attn_dropout=0.0, bias=True,
                 compute_dtype=jnp.float32):
        # NOTE: compute_dtype=jnp.bfloat16 is the recommended deployment default
        # on v6e/v7x (MXU-friendly, f32 accumulation kept); f32 here for parity.
        self.embed_dim = embed_dim
        self.num_heads = num_heads
        self.head_dim = embed_dim // num_heads
        assert self.head_dim * num_heads == embed_dim
        self.scaling = self.head_dim ** (-0.5)
        self.attn_dropout = attn_dropout   # TODO(synk): dropout not applied (eval / p=0.0)
        self.compute_dtype = compute_dtype

        k1, k2 = jax.random.split(key)
        # xavier_uniform_ for in_proj_weight (3E, E): fan_in=E, fan_out=3E
        bound_in = math.sqrt(6.0 / (embed_dim + 3 * embed_dim))
        self.in_proj_weight = jax.random.uniform(
            k1, (3 * embed_dim, embed_dim), jnp.float32, -bound_in, bound_in)
        self.in_proj_bias = jnp.zeros((3 * embed_dim,), jnp.float32) if bias else None
        # xavier_uniform_ for out_proj.weight (E, E)
        bound_out = math.sqrt(6.0 / (embed_dim + embed_dim))
        self.out_proj_weight = jax.random.uniform(
            k2, (embed_dim, embed_dim), jnp.float32, -bound_out, bound_out)
        self.out_proj_bias = jnp.zeros((embed_dim,), jnp.float32) if bias else None

        # ---- kernel-side copies: pre-transposed (K, N), q-scaling folded in ----
        scale_vec = jnp.concatenate([
            jnp.full((embed_dim,), self.scaling, jnp.float32),
            jnp.ones((2 * embed_dim,), jnp.float32),
        ])
        self._w_in_t = (self.in_proj_weight.T * scale_vec[None, :]).astype(compute_dtype)
        self._b_in = (self.in_proj_bias * scale_vec) if self.in_proj_bias is not None else None
        self._w_out_t = self.out_proj_weight.T.astype(compute_dtype)
        self._b_out = self.out_proj_bias
        # approximate EUP reciprocal only when already trading precision for speed
        self._approx_recip = (jnp.dtype(compute_dtype) == jnp.dtype(jnp.bfloat16))

    def __call__(self, query, key=None, value=None, attn_mask=None, need_weights=True):
        # Self-attention (qkv_same) path only.
        if key is not None and key is not query:
            raise NotImplementedError("only self-attention (key is query) supported")
        if value is not None and value is not query:
            raise NotImplementedError("only self-attention (value is query) supported")

        tgt_len, bsz, embed_dim = query.shape
        assert embed_dim == self.embed_dim
        H, Dh = self.num_heads, self.head_dim
        cd = self.compute_dtype

        # --- in-projection: fused (E -> 3E) tiled matmul, scaling pre-folded ---
        x2d = query.reshape(tgt_len * bsz, embed_dim).astype(cd)
        qkv = _linear_pallas(x2d, self._w_in_t, self._b_in, out_dtype=cd)   # (T*B, 3E)

        # --- fold heads: single fused transpose -> (3, B*H, T, Dh) ---
        # TODO(synk): fold this relayout into the in-projection epilogue.
        qkv_folded = (qkv.reshape(tgt_len, bsz, 3, H, Dh)
                          .transpose(2, 1, 3, 0, 4)
                          .reshape(3, bsz * H, tgt_len, Dh))

        # --- attention core (grid over batch, head-batched einsums per step,
        #     output written directly in (T, B, H, Dh) layout) ---
        attn_o, attn_weights = _attention_pallas(
            qkv_folded, H, attn_mask=attn_mask, need_weights=need_weights,
            approx_recip=self._approx_recip)

        # --- (T, B, H, Dh) -> (T*B, E): free reshape, no HBM transpose ---
        attn2d = attn_o.reshape(tgt_len * bsz, embed_dim).astype(cd)

        # --- out projection (tiled) ---
        attn = _linear_pallas(attn2d, self._w_out_t, self._b_out,
                              out_dtype=jnp.float32)
        attn = attn.reshape(tgt_len, bsz, embed_dim)
        return attn, attn_weights


# ----------------------------------------------------------------------------
# Pure-JAX reference (same math) for sanity checks.
# ----------------------------------------------------------------------------
def _reference(module, query, attn_mask=None):
    T, B, E = query.shape
    H, Dh = module.num_heads, module.head_dim
    b_in = module.in_proj_bias if module.in_proj_bias is not None else 0.0
    b_out = module.out_proj_bias if module.out_proj_bias is not None else 0.0
    qkv = query.reshape(T * B, E) @ module.in_proj_weight.T + b_in
    q, k, v = jnp.split(qkv, 3, axis=-1)
    q = q * module.scaling
    fold = lambda t: jnp.swapaxes(t.reshape(T, B * H, Dh), 0, 1)
    qh, kh, vh = fold(q), fold(k), fold(v)
    s = jnp.einsum("bqd,bkd->bqk", qh, kh)
    if attn_mask is not None:
        s = s + attn_mask[None]
    p = jax.nn.softmax(s, axis=-1)
    o = jnp.einsum("bqk,bkd->bqd", p, vh)
    attn = jnp.swapaxes(o, 0, 1).reshape(T, B, E)
    attn = attn.reshape(T * B, E) @ module.out_proj_weight.T + b_out
    attn = attn.reshape(T, B, E)
    w = jnp.sum(p.reshape(B, H, T, T), axis=1) / H
    return attn, w


if __name__ == "__main__":
    key = jax.random.PRNGKey(0)
    k_param, k_q, k_param2 = jax.random.split(key, 3)

    tgt_len, bsz, embed_dim, num_heads = 8, 2, 32, 4
    query = jax.random.normal(k_q, (tgt_len, bsz, embed_dim), jnp.float32)

    # 1) f32, bias=True, no mask
    mha = MultiheadAttentionPallas(embed_dim, num_heads, k_param)
    attn, attn_w = mha(query, query, query)
    jax.block_until_ready((attn, attn_w))
    ref_attn, ref_w = _reference(mha, query)
    assert attn.shape == (tgt_len, bsz, embed_dim)
    assert attn_w.shape == (bsz, tgt_len, tgt_len)
    assert jnp.allclose(attn, ref_attn, atol=1e-3, rtol=1e-3)
    assert jnp.allclose(attn_w, ref_w, atol=1e-3, rtol=1e-3)

    # 2) additive (causal) attention mask
    mask = jnp.where(jnp.tril(jnp.ones((tgt_len, tgt_len), bool)),
                     0.0, -1e9).astype(jnp.float32)
    attn_m, attn_w_m = mha(query, query, query, attn_mask=mask)
    jax.block_until_ready((attn_m, attn_w_m))
    ref_attn_m, ref_w_m = _reference(mha, query, attn_mask=mask)
    assert jnp.allclose(attn_m, ref_attn_m, atol=1e-3, rtol=1e-3)
    assert jnp.allclose(attn_w_m, ref_w_m, atol=1e-3, rtol=1e-3)

    # 3) bias=False path
    mha_nb = MultiheadAttentionPallas(embed_dim, num_heads, k_param2, bias=False)
    attn_nb, attn_w_nb = mha_nb(query, query, query)
    jax.block_until_ready((attn_nb, attn_w_nb))
    ref_attn_nb, ref_w_nb = _reference(mha_nb, query)
    assert jnp.allclose(attn_nb, ref_attn_nb, atol=1e-3, rtol=1e-3)
    assert jnp.allclose(attn_w_nb, ref_w_nb, atol=1e-3, rtol=1e-3)

    # 4) need_weights=False fast path (skips the (B,T,S) HBM write entirely)
    attn_nw, w_none = mha(query, query, query, need_weights=False)
    jax.block_until_ready(attn_nw)
    assert w_none is None
    assert jnp.allclose(attn_nw, ref_attn, atol=1e-3, rtol=1e-3)

    # 5) bf16 compute path (MXU-friendly); loose tolerance vs f32 reference
    mha_bf16 = MultiheadAttentionPallas(embed_dim, num_heads, k_param,
                                        compute_dtype=jnp.bfloat16)
    attn_b, attn_w_b = mha_bf16(query, query, query)
    jax.block_until_ready((attn_b, attn_w_b))
    assert jnp.allclose(attn_b.astype(jnp.float32), ref_attn, atol=1e-1, rtol=1e-1)
    assert jnp.allclose(attn_w_b, ref_w, atol=5e-2, rtol=5e-2)

    print("KERNEL_OK")
</pallas_src>

<mosaic_0001>
module attributes {stable_mosaic.version = 11 : i64} {
  func.func @_linear_kernel_bias(%arg0: i32, %arg1: i32, %arg2: i32, %arg3: memref<16x32xf32, #tpu.memory_space<vmem>>, %arg4: memref<32x96xf32, #tpu.memory_space<vmem>>, %arg5: memref<1x96xf32, #tpu.memory_space<vmem>>, %arg6: memref<16x96xf32, #tpu.memory_space<vmem>>, %arg7: memref<16x96xf32, #tpu.memory_space<vmem>>) attributes {dimension_semantics = [#tpu.dimension_semantics<parallel>, #tpu.dimension_semantics<parallel>, #tpu.dimension_semantics<arbitrary>], iteration_bounds = array<i64: 1, 1, 1>, scalar_prefetch = 0 : i64, scratch_operands = 1 : i64, tpu.core_type = #tpu.core_type<tc>, window_params = [{transform_indices = @transform_0, window_bounds = array<i64: 16, 32>}, {transform_indices = @transform_1, window_bounds = array<i64: 32, 96>}, {transform_indices = @transform_2, window_bounds = array<i64: 1, 96>}, {transform_indices = @transform_3, window_bounds = array<i64: 16, 96>}]} {
    %c0_i32 = arith.constant 0 : i32
    %0 = arith.cmpi eq, %arg2, %c0_i32 : i32
    %1 = arith.extui %0 : i1 to i32
    %c0_i32_0 = arith.constant 0 : i32
    %2 = arith.cmpi ne, %1, %c0_i32_0 : i32
    scf.if %2 {
      %cst_10 = arith.constant 0.000000e+00 : f32
      %12 = vector.broadcast %cst_10 : f32 to vector<16x96xf32>
      %c0_11 = arith.constant 0 : index
      %c0_12 = arith.constant 0 : index
      %13 = vector.load %arg7[%c0_11, %c0_12] : memref<16x96xf32, #tpu.memory_space<vmem>>, vector<16x96xf32>
      tpu.vector_store %arg7[%c0_11, %c0_12], %12 {strides = array<i32>} : memref<16x96xf32, #tpu.memory_space<vmem>>, vector<16x96xf32>,
    } else {
    }
    %c0 = arith.constant 0 : index
    %c0_1 = arith.constant 0 : index
    %3 = vector.load %arg7[%c0, %c0_1] : memref<16x96xf32, #tpu.memory_space<vmem>>, vector<16x96xf32>
    %c0_2 = arith.constant 0 : index
    %c0_3 = arith.constant 0 : index
    %4 = vector.load %arg3[%c0_2, %c0_3] : memref<16x32xf32, #tpu.memory_space<vmem>>, vector<16x32xf32>
    %c0_4 = arith.constant 0 : index
    %c0_5 = arith.constant 0 : index
    %5 = vector.load %arg4[%c0_4, %c0_5] : memref<32x96xf32, #tpu.memory_space<vmem>>, vector<32x96xf32>
    %cst = arith.constant dense<0.000000e+00> : vector<16x96xf32>
    %6 = tpu.matmul %4, %5, %cst {dimension_numbers = #tpu.dot_dimension_numbers<[1], [0], [0], [1], [0, 0, 1, 1], [], []>} : vector<16x32xf32>, vector<32x96xf32>, vector<16x96xf32> -> vector<16x96xf32>
    %7 = arith.addf %3, %6 : vector<16x96xf32>
    %c0_6 = arith.constant 0 : index
    %c0_7 = arith.constant 0 : index
    %8 = vector.load %arg7[%c0_6, %c0_7] : memref<16x96xf32, #tpu.memory_space<vmem>>, vector<16x96xf32>
    tpu.vector_store %arg7[%c0_6, %c0_7], %7 {strides = array<i32>} : memref<16x96xf32, #tpu.memory_space<vmem>>, vector<16x96xf32>,
    %c0_i32_8 = arith.constant 0 : i32
    %9 = arith.cmpi eq, %arg2, %c0_i32_8 : i32
    %10 = arith.extui %9 : i1 to i32
    %c0_i32_9 = arith.constant 0 : i32
    %11 = arith.cmpi ne, %10, %c0_i32_9 : i32
    scf.if %11 {
      %c0_10 = arith.constant 0 : index
      %c0_11 = arith.constant 0 : index
      %12 = vector.load %arg7[%c0_10, %c0_11] : memref<16x96xf32, #tpu.memory_space<vmem>>, vector<16x96xf32>
      %c0_12 = arith.constant 0 : index
      %c0_13 = arith.constant 0 : index
      %13 = vector.load %arg5[%c0_12, %c0_13] : memref<1x96xf32, #tpu.memory_space<vmem>>, vector<1x96xf32>
      %14 = vector.broadcast %13 : vector<1x96xf32> to vector<16x96xf32>
      %15 = arith.addf %12, %14 : vector<16x96xf32>
      %c0_14 = arith.constant 0 : index
      %c0_15 = arith.constant 0 : index
      %16 = vector.load %arg6[%c0_14, %c0_15] : memref<16x96xf32, #tpu.memory_space<vmem>>, vector<16x96xf32>
      tpu.vector_store %arg6[%c0_14, %c0_15], %15 {strides = array<i32>} : memref<16x96xf32, #tpu.memory_space<vmem>>, vector<16x96xf32>,
    } else {
    }
    return
  }
  func.func @transform_0(%arg0: i32, %arg1: i32, %arg2: i32) -> (i32, i32) {
    %c0_i32 = arith.constant 0 : i32
    return %arg0, %arg2 : i32, i32
  }
  func.func @transform_1(%arg0: i32, %arg1: i32, %arg2: i32) -> (i32, i32) {
    %c0_i32 = arith.constant 0 : i32
    return %arg2, %arg1 : i32, i32
  }
  func.func @transform_2(%arg0: i32, %arg1: i32, %arg2: i32) -> (i32, i32) {
    %c0_i32 = arith.constant 0 : i32
    %c0_i32_0 = arith.constant 0 : i32
    return %c0_i32, %arg1 : i32, i32
  }
  func.func @transform_3(%arg0: i32, %arg1: i32, %arg2: i32) -> (i32, i32) {
    %c0_i32 = arith.constant 0 : i32
    return %arg0, %arg1 : i32, i32
  }
}

</mosaic_0001>

<llo_original>
// kernel: tpu_custom_call.1
$region0: #{tpu_custom_call.1}
  #allocation0 [shape = 'u32[]', space=smem, size = 0x4, offset = 0x4, fixed_abs, tag = 'smem constant byte address 0x4 - core index']
  #allocation1 [shape = 'u32[72,128]{1,0:T(1,128)}', space=vmem, size = 0x9000, scoped, tag = 'internal scratch']
  #allocation2 [shape = 'f32[16,96]{1,0:T(8,128)}', space=vmem, size = 0x2000, scoped, tag = 'scratch operand']
  %s0 = inlined_call_operand.hbm [shape: f32[16,32], index: 0, kind: input, shape index: {}]
  %s1 = inlined_call_operand.hbm [shape: f32[32,96], index: 1, kind: input, shape index: {}]
  %s2 = inlined_call_operand.vmem [shape: f32[1,96], index: 2, kind: input, shape index: {}]
  %s3 = inlined_call_operand.hbm [shape: f32[16,96], index: 3, kind: output, shape index: {}]
  %s4 = sld [smem:[#allocation0]]
  $region38: #{tpu_custom_call.1} parent=0
    _
  %s6 = ssub.s32 1, %s4
  %s7 = scalar_select 0, %s6, %s4
  $region1: #{tpu_custom_call.1} parent=0
    #allocation3 [shape = 'u8[8192]{0}', space=vmem, size = 0x2000, scoped, tag = 'input window, operand 0, single buffered']
    #allocation4 [shape = 's32[1]{0}', space=sflag, size = 0x4, scoped, tag = 'scoped memory for tpu_custom_call.1']
    #allocation5 [shape = 's32[1]{0}', space=sflag, size = 0x4, scoped, tag = 'scoped memory for tpu_custom_call.1']
    #allocation6 [shape = 'u8[16384]{0}', space=vmem, size = 0x4000, scoped, tag = 'input window, operand 1, single buffered']
    #allocation7 [shape = 's32[1]{0}', space=sflag, size = 0x4, scoped, tag = 'scoped memory for tpu_custom_call.1']
    #allocation8 [shape = 'u8[8192]{0}', space=vmem, size = 0x2000, scoped, tag = 'output window, operand 0, single buffered']
    %8 = vsyncpa [#allocation4], 0
    %9 = vsyncpa [#allocation7], 0
    %10 = vsyncpa [#allocation5], 0
    // Predicated region
    $region2: #{tpu_custom_call.1} parent=1 // pred_check
      _
    $region3: #{tpu_custom_call.1} parent=1 // pred_check_branch
      %12 = sbr.rel (0) target = $region5
    $region4: #{tpu_custom_call.1} parent=1 // pred_region
      %14 = vsyncadd [#allocation4], 0
      %s15 = sshll.u32 %s0, 4
      %s16 = int_to_ptr.hbm [resolvable:$true] %s15
      %s17 = sshll.u32 [#allocation3], 4
      %s18 = int_to_ptr.vmem [resolvable:$true] %s17
      %23 = dma.hbm_to_vmem [thread:$0]  %s16, 256, %s18, [#allocation4], 128, 128, 8
    $region5: #{tpu_custom_call.1} parent=1 // pred_fallthru
      _
    // Predicated region
    $region6: #{tpu_custom_call.1} parent=1 // pred_check
      _
    $region7: #{tpu_custom_call.1} parent=1 // pred_check_branch
      %25 = sbr.rel (0) target = $region9
    $region8: #{tpu_custom_call.1} parent=1 // pred_region
      %27 = vsyncadd [#allocation7], 0
      %s28 = sshll.u32 %s1, 4
      %s29 = int_to_ptr.hbm [resolvable:$true] %s28
      %s30 = sshll.u32 [#allocation6], 4
      %s31 = int_to_ptr.vmem [resolvable:$true] %s30
      %36 = dma.hbm_to_vmem [thread:$0]  %s29, 512, %s31, [#allocation7], 128, 128, 8
    $region9: #{tpu_custom_call.1} parent=1 // pred_fallthru
      _
    // Predicated region
    $region10: #{tpu_custom_call.1} parent=1 // pred_check
      _
    $region11: #{tpu_custom_call.1} parent=1 // pred_check_branch
      %38 = sbr.rel (0) target = $region13
    $region12: #{tpu_custom_call.1} parent=1 // pred_region
      _
    $region13: #{tpu_custom_call.1} parent=1 // pred_fallthru
      _
    // Predicated region
    $region14: #{tpu_custom_call.1} parent=1 // pred_check
      _
    $region15: #{tpu_custom_call.1} parent=1 // pred_check_branch
      %40 = sbr.rel (0) target = $region17
    $region16: #{tpu_custom_call.1} parent=1 // pred_region
      %42 = dma.done [#allocation4], 256
    $region17: #{tpu_custom_call.1} parent=1 // pred_fallthru
      _
    // Predicated region
    $region18: #{tpu_custom_call.1} parent=1 // pred_check
      _
    $region19: #{tpu_custom_call.1} parent=1 // pred_check_branch
      %44 = sbr.rel (0) target = $region21
    $region20: #{tpu_custom_call.1} parent=1 // pred_region
      %46 = dma.done [#allocation7], 512
    $region21: #{tpu_custom_call.1} parent=1 // pred_fallthru
      _
    %p47 = scmp.eq.s32.totalorder 0, 0
    // Predicated region
    $region22: #{tpu_custom_call.1} parent=1 // pred_check
      %p48 = pneg %p47
    $region23: #{tpu_custom_call.1} parent=1 // pred_check_branch
      %50 = sbr.rel (%p48) target = $region25
    $region24: #{tpu_custom_call.1} parent=1 // pred_region
      %vm51 = vcmask 785408
      %52 = vst.msk [vmem:[#allocation2] sm:$0xff] %vm51, 0.0
      %53 = vst.msk [vmem:[#allocation2 + $0x8] sm:$0xff] %vm51, 0.0
    $region25: #{tpu_custom_call.1} parent=1 // pred_fallthru
      _
    %v54 = vld [vmem:[#allocation2] sm:$0xff]
    %v55 = vld [vmem:[#allocation2 + $0x8] sm:$0xff]
    %v56 = vld [vmem:[#allocation3] sm:$0xff]
    %v57 = vld [vmem:[#allocation3 + $0x8] sm:$0xff]
    %v58 = vld [vmem:[#allocation6] sm:$0xff]
    %v59 = vld [vmem:[#allocation6 + $0x8] sm:$0xff]
    %v60 = vld [vmem:[#allocation6 + $0x10] sm:$0xff]
    %v61 = vld [vmem:[#allocation6 + $0x18] sm:$0xff]
    %vm62 = vcmask 261120
    %v64 = vsel %vm62, %v56, 0
    %v67 = vsel %vm62, %v57, 0
    %69 = vmatpush.msra.mxu0 0.0
    %70 = vmatpush.msra.mxu0 0.0
    %71 = vmatpush.msra.mxu0 0.0
    %72 = vmatpush.msra.mxu0 0.0
    %73 = vmatpush.msra.mxu0 0.0
    %74 = vmatpush.msra.mxu0 0.0
    %75 = vmatpush.msra.mxu0 0.0
    %76 = vmatpush.msra.mxu0 0.0
    %77 = vmatpush.msra.mxu0 0.0
    %78 = vmatpush.msra.mxu0 0.0
    %79 = vmatpush.msra.mxu0 0.0
    %80 = vmatpush.msra.mxu0 0.0
    %81 = vmatpush.msra.mxu0 %v61
    %82 = vmatpush.msra.mxu0 %v60
    %83 = vmatpush.msra.mxu0 %v59
    %84 = vmatpush.msra.mxu0 %v58
    %85 = vmatmul.f32.gmra.mxu0 %v64
    %v86 = vpop.f32.mrf.mxu0
    %v87 = vadd.f32 0.0, %v86
    %88 = vmatmul.f32.gmra.mxu0 %v67
    %v89 = vpop.f32.mrf.mxu0
    %v90 = vadd.f32 0.0, %v89
    %91 = vdwg.mxu0
    %v92 = vadd.f32 %v54, %v87
    %v93 = vadd.f32 %v55, %v90
    %vm94 = vcmask 785408
    %95 = vst.msk [vmem:[#allocation2] sm:$0xff] %vm94, %v92
    %96 = vst.msk [vmem:[#allocation2 + $0x8] sm:$0xff] %vm94, %v93
    // Predicated region
    $region26: #{tpu_custom_call.1} parent=1 // pred_check
      %p97 = pneg %p47
    $region27: #{tpu_custom_call.1} parent=1 // pred_check_branch
      %99 = sbr.rel (%p97) target = $region29
    $region28: #{tpu_custom_call.1} parent=1 // pred_region
      %v100 = vld [vmem:[#allocation2] sm:$0xff]
      %v101 = vld [vmem:[#allocation2 + $0x8] sm:$0xff]
      %v102 = vld [vmem:[%s2] sm:$0x1]
      %v104 = vperm.slane %v102, 0
      %v106 = vadd.f32 %v100, %v104
      %v107 = vadd.f32 %v101, %v104
      %108 = vst.msk [vmem:[#allocation8] sm:$0xff] %vm94, %v106
      %109 = vst.msk [vmem:[#allocation8 + $0x8] sm:$0xff] %vm94, %v107
    $region29: #{tpu_custom_call.1} parent=1 // pred_fallthru
      _
    // Predicated region
    $region30: #{tpu_custom_call.1} parent=1 // pred_check
      _
    $region31: #{tpu_custom_call.1} parent=1 // pred_check_branch
      %111 = sbr.rel (0) target = $region33
    $region32: #{tpu_custom_call.1} parent=1 // pred_region
      %113 = vsyncadd [#allocation5], 0
      %s114 = sshll.u32 [#allocation8], 4
      %s115 = int_to_ptr.vmem [resolvable:$true] %s114
      %s116 = sshll.u32 %s3, 4
      %s117 = int_to_ptr.hbm [resolvable:$true] %s116
      %122 = dma.vmem_to_hbm [thread:$0]  %s115, 256, %s117, [#allocation5], 128, 128, 8
    $region33: #{tpu_custom_call.1} parent=1 // pred_fallthru
      _
    // Predicated region
    $region34: #{tpu_custom_call.1} parent=1 // pred_check
      _
    $region35: #{tpu_custom_call.1} parent=1 // pred_check_branch
      %124 = sbr.rel (0) target = $region37
    $region36: #{tpu_custom_call.1} parent=1 // pred_region
      %126 = dma.done [#allocation5], 256
    $region37: #{tpu_custom_call.1} parent=1 // pred_fallthru
      _
    %127 = vsyncpa [#allocation4], 1
    %128 = vsyncpa [#allocation7], 1
    %129 = vsyncpa [#allocation5], 1

</llo_original>
